<compile_context>
chip_gen: v7x
topology: tpu7x:2x2x1
jax: 0.10.0
libtpu: 0.0.40
codegen_flags: <defaults>
</compile_context>

<pallas_src>
import jax
import jax.numpy as jnp
from jax.experimental import pallas as pl
from jax.experimental.pallas import tpu as pltpu


def _fused_mlp_softmax_kernel(x1_ref, x2_ref, w_top_ref, w_bot_ref, b_ref, o_ref):
    # Single effective affine map over the 3 classes (concat folded into a
    # split matmul: cat([x1, x2]) @ W_eff == x1 @ W_top + x2 @ W_bot).
    y = (jnp.dot(x1_ref[...], w_top_ref[...], preferred_element_type=jnp.float32)
         + jnp.dot(x2_ref[...], w_bot_ref[...], preferred_element_type=jnp.float32)
         + b_ref[...])                                               # (TB, 3)
    # Max-stabilized softmax over the class dim (== torch Softmax(dim=1)).
    m = jnp.max(y, axis=-1, keepdims=True)
    e = jnp.exp(y - m)
    denom = jnp.sum(e, axis=-1, keepdims=True)
    probs = e * pl.reciprocal(denom, approx=True)                    # EUP slot
    # Emit only the first two class probabilities (== y[:, :2]).
    o_ref[...] = probs[:, :2]


def fold_params(params):
    """Collapse the 3 bias-only Linear layers into one (2F, 3) affine map.

    Done once ahead of time (tiny XLA matmuls), not per forward call.
    Returns (w_top, w_bot, b_eff) with w_top/w_bot each (F, 3), b_eff (1, 3).
    """
    w1, b1, w2, b2, w3, b3 = params
    w_eff = w1 @ w2 @ w3                                             # (2F, 3)
    b_eff = b1 @ w2 @ w3 + b2 @ w3 + b3                              # (1, 3)
    f = w1.shape[0] // 2
    return w_eff[:f], w_eff[f:], b_eff


def adamix_lambda_generator_forward(x1, x2, folded_params, *, tb=512):
    """x1, x2: (B, F) float32. Returns (B, 2) softmax probs (first 2 of 3)."""
    w_top, w_bot, b_eff = folded_params
    B, F = x1.shape

    # Tile the batch only when it is large and divides evenly; otherwise the
    # whole problem is one block (it is tiny and entirely VMEM-resident).
    if B <= tb or B % tb != 0:
        tb = B
    grid = (B // tb,)

    return pl.pallas_call(
        _fused_mlp_softmax_kernel,
        out_shape=jax.ShapeDtypeStruct((B, 2), jnp.float32),
        grid_spec=pltpu.PrefetchScalarGridSpec(
            num_scalar_prefetch=0,
            grid=grid,
            in_specs=[
                pl.BlockSpec((tb, F), lambda i: (i, 0)),             # x1 tile
                pl.BlockSpec((tb, F), lambda i: (i, 0)),             # x2 tile
                pl.BlockSpec((F, 3), lambda i: (0, 0)),              # W_top (resident)
                pl.BlockSpec((F, 3), lambda i: (0, 0)),              # W_bot (resident)
                pl.BlockSpec((1, 3), lambda i: (0, 0)),              # b_eff (resident)
            ],
            out_specs=pl.BlockSpec((tb, 2), lambda i: (i, 0)),
        ),
        compiler_params=pltpu.CompilerParams(
            dimension_semantics=("parallel",)),                      # megacore / v7x
    )(x1, x2, w_top, w_bot, b_eff)


def init_params(key, num_input_features):
    """Deterministic synthetic parameters matching the module's shapes.

    PyTorch nn.Linear stores weight as (out, in); we store (in, out) so the
    math is x @ W + b (numerically identical layout choice).
    """
    f_in = num_input_features * 2
    k1, k2, k3, k4, k5, k6 = jax.random.split(key, 6)
    w1 = jax.random.normal(k1, (f_in, 100), jnp.float32) * 0.1
    b1 = jax.random.normal(k2, (1, 100), jnp.float32) * 0.1
    w2 = jax.random.normal(k3, (100, 100), jnp.float32) * 0.1
    b2 = jax.random.normal(k4, (1, 100), jnp.float32) * 0.1
    w3 = jax.random.normal(k5, (100, 3), jnp.float32) * 0.1
    b3 = jax.random.normal(k6, (1, 3), jnp.float32) * 0.1
    return (w1, b1, w2, b2, w3, b3)


if __name__ == "__main__":
    num_input_features = 16
    batch = 8

    key = jax.random.PRNGKey(0)
    kp, kx1, kx2 = jax.random.split(key, 3)
    params = init_params(kp, num_input_features)
    folded = fold_params(params)                      # one-time algebraic collapse
    x1 = jax.random.normal(kx1, (batch, num_input_features), jnp.float32)
    x2 = jax.random.normal(kx2, (batch, num_input_features), jnp.float32)

    out = adamix_lambda_generator_forward(x1, x2, folded)
    out = jax.block_until_ready(out)

    # Pure-JAX reference using the ORIGINAL un-collapsed three-layer form.
    w1, b1, w2, b2, w3, b3 = params
    x = jnp.concatenate([x1, x2], axis=1)
    y = ((x @ w1 + b1) @ w2 + b2) @ w3 + b3
    ref = jax.nn.softmax(y, axis=1)[:, :2]

    assert out.shape == (batch, 2)
    # Tolerance accounts for fp32 re-association of the collapsed weights and
    # the EUP approximate reciprocal used for the softmax divide.
    assert jnp.allclose(out, ref, atol=1e-3, rtol=1e-3)

    print("KERNEL_OK")
</pallas_src>

<mosaic_0001>
module attributes {stable_mosaic.version = 11 : i64} {
  func.func @_fused_mlp_softmax_kernel(%arg0: i32, %arg1: memref<8x16xf32, #tpu.memory_space<vmem>>, %arg2: memref<8x16xf32, #tpu.memory_space<vmem>>, %arg3: memref<16x3xf32, #tpu.memory_space<vmem>>, %arg4: memref<16x3xf32, #tpu.memory_space<vmem>>, %arg5: memref<1x3xf32, #tpu.memory_space<vmem>>, %arg6: memref<8x2xf32, #tpu.memory_space<vmem>>) attributes {dimension_semantics = [#tpu.dimension_semantics<parallel>], iteration_bounds = array<i64: 1>, scalar_prefetch = 0 : i64, scratch_operands = 0 : i64, tpu.core_type = #tpu.core_type<tc>, window_params = [{transform_indices = @transform_0, window_bounds = array<i64: 8, 16>}, {transform_indices = @transform_1, window_bounds = array<i64: 8, 16>}, {pipeline_mode = #tpu.pipeline_mode<synchronous>, transform_indices = @transform_2, window_bounds = array<i64: 16, 3>}, {pipeline_mode = #tpu.pipeline_mode<synchronous>, transform_indices = @transform_3, window_bounds = array<i64: 16, 3>}, {pipeline_mode = #tpu.pipeline_mode<synchronous>, transform_indices = @transform_4, window_bounds = array<i64: 1, 3>}, {transform_indices = @transform_5, window_bounds = array<i64: 8, 2>}]} {
    %c0 = arith.constant 0 : index
    %c0_0 = arith.constant 0 : index
    %0 = vector.load %arg1[%c0, %c0_0] : memref<8x16xf32, #tpu.memory_space<vmem>>, vector<8x16xf32>
    %c0_1 = arith.constant 0 : index
    %c0_2 = arith.constant 0 : index
    %1 = vector.load %arg3[%c0_1, %c0_2] : memref<16x3xf32, #tpu.memory_space<vmem>>, vector<16x3xf32>
    %cst = arith.constant dense<0.000000e+00> : vector<8x3xf32>
    %2 = tpu.matmul %0, %1, %cst {dimension_numbers = #tpu.dot_dimension_numbers<[1], [0], [0], [1], [0, 0, 1, 1], [], []>} : vector<8x16xf32>, vector<16x3xf32>, vector<8x3xf32> -> vector<8x3xf32>
    %c0_3 = arith.constant 0 : index
    %c0_4 = arith.constant 0 : index
    %3 = vector.load %arg2[%c0_3, %c0_4] : memref<8x16xf32, #tpu.memory_space<vmem>>, vector<8x16xf32>
    %c0_5 = arith.constant 0 : index
    %c0_6 = arith.constant 0 : index
    %4 = vector.load %arg4[%c0_5, %c0_6] : memref<16x3xf32, #tpu.memory_space<vmem>>, vector<16x3xf32>
    %cst_7 = arith.constant dense<0.000000e+00> : vector<8x3xf32>
    %5 = tpu.matmul %3, %4, %cst_7 {dimension_numbers = #tpu.dot_dimension_numbers<[1], [0], [0], [1], [0, 0, 1, 1], [], []>} : vector<8x16xf32>, vector<16x3xf32>, vector<8x3xf32> -> vector<8x3xf32>
    %6 = arith.addf %2, %5 : vector<8x3xf32>
    %c0_8 = arith.constant 0 : index
    %c0_9 = arith.constant 0 : index
    %7 = vector.load %arg5[%c0_8, %c0_9] : memref<1x3xf32, #tpu.memory_space<vmem>>, vector<1x3xf32>
    %8 = vector.broadcast %7 : vector<1x3xf32> to vector<8x3xf32>
    %9 = arith.addf %6, %8 : vector<8x3xf32>
    %cst_10 = arith.constant dense<0xFF800000> : vector<8xf32>
    %10 = vector.multi_reduction <maximumf>, %9, %cst_10 [1] : vector<8x3xf32> to vector<8xf32>
    %11 = vector.shape_cast %10 : vector<8xf32> to vector<8x1xf32>
    %12 = vector.broadcast %11 : vector<8x1xf32> to vector<8x3xf32>
    %13 = arith.subf %9, %12 : vector<8x3xf32>
    %14 = math.exp %13 : vector<8x3xf32>
    %cst_11 = arith.constant dense<0.000000e+00> : vector<8xf32>
    %15 = vector.multi_reduction <add>, %14, %cst_11 [1] : vector<8x3xf32> to vector<8xf32>
    %16 = vector.shape_cast %15 : vector<8xf32> to vector<8x1xf32>
    %17 = tpu.reciprocal %16 {approx = true} : vector<8x1xf32> -> vector<8x1xf32>
    %18 = vector.broadcast %17 : vector<8x1xf32> to vector<8x3xf32>
    %19 = arith.mulf %14, %18 : vector<8x3xf32>
    %20 = vector.extract_strided_slice %19 {offsets = [0, 0], sizes = [8, 2], strides = [1, 1]} : vector<8x3xf32> to vector<8x2xf32>
    %c0_12 = arith.constant 0 : index
    %c0_13 = arith.constant 0 : index
    %21 = vector.load %arg6[%c0_12, %c0_13] : memref<8x2xf32, #tpu.memory_space<vmem>>, vector<8x2xf32>
    tpu.vector_store %arg6[%c0_12, %c0_13], %20 {strides = array<i32>} : memref<8x2xf32, #tpu.memory_space<vmem>>, vector<8x2xf32>,
    return
  }
  func.func @transform_0(%arg0: i32) -> (i32, i32) {
    %c0_i32 = arith.constant 0 : i32
    %c0_i32_0 = arith.constant 0 : i32
    return %arg0, %c0_i32 : i32, i32
  }
  func.func @transform_1(%arg0: i32) -> (i32, i32) {
    %c0_i32 = arith.constant 0 : i32
    %c0_i32_0 = arith.constant 0 : i32
    return %arg0, %c0_i32 : i32, i32
  }
  func.func @transform_2(%arg0: i32) -> (i32, i32) {
    %c0_i32 = arith.constant 0 : i32
    %c0_i32_0 = arith.constant 0 : i32
    %c0_i32_1 = arith.constant 0 : i32
    return %c0_i32, %c0_i32_0 : i32, i32
  }
  func.func @transform_3(%arg0: i32) -> (i32, i32) {
    %c0_i32 = arith.constant 0 : i32
    %c0_i32_0 = arith.constant 0 : i32
    %c0_i32_1 = arith.constant 0 : i32
    return %c0_i32, %c0_i32_0 : i32, i32
  }
  func.func @transform_4(%arg0: i32) -> (i32, i32) {
    %c0_i32 = arith.constant 0 : i32
    %c0_i32_0 = arith.constant 0 : i32
    %c0_i32_1 = arith.constant 0 : i32
    return %c0_i32, %c0_i32_0 : i32, i32
  }
  func.func @transform_5(%arg0: i32) -> (i32, i32) {
    %c0_i32 = arith.constant 0 : i32
    %c0_i32_0 = arith.constant 0 : i32
    return %arg0, %c0_i32 : i32, i32
  }
}

</mosaic_0001>

<llo_original>
// kernel: tpu_custom_call.1
$region0: #{tpu_custom_call.1}
  #allocation0 [shape = 'u32[]', space=smem, size = 0x4, offset = 0x4, fixed_abs, tag = 'smem constant byte address 0x4 - core index']
  #allocation1 [shape = 'u32[144,128]{1,0:T(1,128)}', space=vmem, size = 0x12000, scoped, tag = 'internal scratch']
  %s0 = inlined_call_operand.vmem [shape: f32[8,16], index: 0, kind: input, shape index: {}]
  %s1 = inlined_call_operand.vmem [shape: f32[8,16], index: 1, kind: input, shape index: {}]
  %s2 = inlined_call_operand.vmem [shape: f32[16,3], index: 2, kind: input, shape index: {}]
  %s3 = inlined_call_operand.vmem [shape: f32[16,3], index: 3, kind: input, shape index: {}]
  %s4 = inlined_call_operand.vmem [shape: f32[1,3], index: 4, kind: input, shape index: {}]
  %s5 = inlined_call_operand.vmem [shape: f32[8,2], index: 5, kind: output, shape index: {}]
  %s6 = sld [smem:[#allocation0]]
  $region30: #{tpu_custom_call.1} parent=0
    _
  %s8 = ssub.s32 1, %s6
  %s9 = scalar_select 0, %s8, %s6
  // Predicated region
  $region2: #{tpu_custom_call.1} parent=0 // pred_check
    _
  $region3: #{tpu_custom_call.1} parent=0 // pred_check_branch
    %11 = sbr.rel (0) target = $region5
  $region4: #{tpu_custom_call.1} parent=0 // pred_region
    _
  $region5: #{tpu_custom_call.1} parent=0 // pred_fallthru
    _
  // Predicated region
  $region6: #{tpu_custom_call.1} parent=0 // pred_check
    _
  $region7: #{tpu_custom_call.1} parent=0 // pred_check_branch
    %13 = sbr.rel (0) target = $region9
  $region8: #{tpu_custom_call.1} parent=0 // pred_region
    _
  $region9: #{tpu_custom_call.1} parent=0 // pred_fallthru
    _
  // Predicated region
  $region10: #{tpu_custom_call.1} parent=0 // pred_check
    _
  $region11: #{tpu_custom_call.1} parent=0 // pred_check_branch
    %15 = sbr.rel (0) target = $region13
  $region12: #{tpu_custom_call.1} parent=0 // pred_region
    _
  $region13: #{tpu_custom_call.1} parent=0 // pred_fallthru
    _
  // Predicated region
  $region14: #{tpu_custom_call.1} parent=0 // pred_check
    _
  $region15: #{tpu_custom_call.1} parent=0 // pred_check_branch
    %17 = sbr.rel (0) target = $region17
  $region16: #{tpu_custom_call.1} parent=0 // pred_region
    _
  $region17: #{tpu_custom_call.1} parent=0 // pred_fallthru
    _
  // Predicated region
  $region18: #{tpu_custom_call.1} parent=0 // pred_check
    _
  $region19: #{tpu_custom_call.1} parent=0 // pred_check_branch
    %19 = sbr.rel (0) target = $region21
  $region20: #{tpu_custom_call.1} parent=0 // pred_region
    _
  $region21: #{tpu_custom_call.1} parent=0 // pred_fallthru
    _
  %v20 = vld [vmem:[%s0] sm:$0xff]
  %v21 = vld [vmem:[%s2] sm:$0xff]
  %v22 = vld [vmem:[%s2 + $0x8] sm:$0xff]
  %v23 = vld [vmem:[%s1] sm:$0xff]
  %v24 = vld [vmem:[%s3] sm:$0xff]
  %v25 = vld [vmem:[%s3 + $0x8] sm:$0xff]
  %vm26 = vcmask 130048
  %v28 = vsel %vm26, %v23, 0
  %30 = vmatprep.subr.mxu0 0.0
  %31 = vmatpush1.msra.mxu0 %v24
  %32 = vmatprep.subr.mxu0 0.0
  %33 = vmatpush1.msra.mxu0 %v25
  %34 = vmatprep.subr.mxu0 0.0
  %35 = vmatpush1.msra.mxu0 0.0
  %36 = vmatprep.subr.mxu0 0.0
  %37 = vmatpush1.msra.mxu0 0.0
  %38 = vmatprep.subr.mxu0 0.0
  %39 = vmatpush1.msra.mxu0 0.0
  %40 = vmatprep.subr.mxu0 0.0
  %41 = vmatpush1.msra.mxu0 0.0
  %42 = vmatprep.subr.mxu0 0.0
  %43 = vmatpush1.msra.mxu0 0.0
  %44 = vmatprep.subr.mxu0 0.0
  %45 = vmatpush1.msra.mxu0 0.0
  %46 = vmatprep.subr.mxu0 0.0
  %47 = vmatpush1.msra.mxu0 0.0
  %48 = vmatprep.subr.mxu0 0.0
  %49 = vmatpush1.msra.mxu0 0.0
  %50 = vmatprep.subr.mxu0 0.0
  %51 = vmatpush1.msra.mxu0 0.0
  %52 = vmatprep.subr.mxu0 0.0
  %53 = vmatpush1.msra.mxu0 0.0
  %54 = vmatprep.subr.mxu0 0.0
  %55 = vmatpush1.msra.mxu0 0.0
  %56 = vmatprep.subr.mxu0 0.0
  %57 = vmatpush1.msra.mxu0 0.0
  %58 = vmatprep.subr.mxu0 0.0
  %59 = vmatpush1.msra.mxu0 0.0
  %60 = vmatprep.subr.mxu0 0.0
  %61 = vmatpush1.msra.mxu0 0.0
  %62 = vmatprep.subr.mxu0 0.0
  %63 = vmatpush1.msra.mxu0 0.0
  %64 = vmatprep.subr.mxu0 0.0
  %65 = vmatpush1.msra.mxu0 0.0
  %66 = vmatprep.subr.mxu0 0.0
  %67 = vmatpush1.msra.mxu0 0.0
  %68 = vmatprep.subr.mxu0 0.0
  %69 = vmatpush1.msra.mxu0 0.0
  %70 = vmatprep.subr.mxu0 0.0
  %71 = vmatpush1.msra.mxu0 0.0
  %72 = vmatprep.subr.mxu0 0.0
  %73 = vmatpush1.msra.mxu0 0.0
  %74 = vmatprep.subr.mxu0 0.0
  %75 = vmatpush1.msra.mxu0 0.0
  %76 = vmatprep.subr.mxu0 0.0
  %77 = vmatpush1.msra.mxu0 0.0
  %78 = vmatprep.subr.mxu0 0.0
  %79 = vmatpush1.msra.mxu0 0.0
  %80 = vmatprep.subr.mxu0 0.0
  %81 = vmatpush1.msra.mxu0 0.0
  %82 = vmatprep.subr.mxu0 0.0
  %83 = vmatpush1.msra.mxu0 0.0
  %84 = vmatprep.subr.mxu0 0.0
  %85 = vmatpush1.msra.mxu0 0.0
  %86 = vmatprep.subr.mxu0 0.0
  %87 = vmatpush1.msra.mxu0 0.0
  %88 = vmatprep.subr.mxu0 0.0
  %89 = vmatpush1.msra.mxu0 0.0
  %90 = vmatprep.subr.mxu0 0.0
  %91 = vmatpush1.msra.mxu0 0.0
  %92 = vmatprep.subr.mxu0 0.0
  %93 = vmatpush1.msra.mxu0 0.0
  %94 = vmatprep.mubr.f32.mxu0 0.0
  %95 = vmatmul.mubr.f32.gmra.mrb[0].mxu0 %v28
  %v96 = vpop.f32.mrb[0].mxu0
  %v97 = vadd.f32 0.0, %v96
  %v98 = vpop.f32.mrb[0].mxu0
  %99 = vdwg.mxu0
  %v101 = vsel %vm26, %v20, 0
  %103 = vmatprep.subr.mxu0 0.0
  %104 = vmatpush1.msra.mxu0 %v21
  %105 = vmatprep.subr.mxu0 0.0
  %106 = vmatpush1.msra.mxu0 %v22
  %107 = vmatprep.subr.mxu0 0.0
  %108 = vmatpush1.msra.mxu0 0.0
  %109 = vmatprep.subr.mxu0 0.0
  %110 = vmatpush1.msra.mxu0 0.0
  %111 = vmatprep.subr.mxu0 0.0
  %112 = vmatpush1.msra.mxu0 0.0
  %113 = vmatprep.subr.mxu0 0.0
  %114 = vmatpush1.msra.mxu0 0.0
  %115 = vmatprep.subr.mxu0 0.0
  %116 = vmatpush1.msra.mxu0 0.0
  %117 = vmatprep.subr.mxu0 0.0
  %118 = vmatpush1.msra.mxu0 0.0
  %119 = vmatprep.subr.mxu0 0.0
  %120 = vmatpush1.msra.mxu0 0.0
  %121 = vmatprep.subr.mxu0 0.0
  %122 = vmatpush1.msra.mxu0 0.0
  %123 = vmatprep.subr.mxu0 0.0
  %124 = vmatpush1.msra.mxu0 0.0
  %125 = vmatprep.subr.mxu0 0.0
  %126 = vmatpush1.msra.mxu0 0.0
  %127 = vmatprep.subr.mxu0 0.0
  %128 = vmatpush1.msra.mxu0 0.0
  %129 = vmatprep.subr.mxu0 0.0
  %130 = vmatpush1.msra.mxu0 0.0
  %131 = vmatprep.subr.mxu0 0.0
  %132 = vmatpush1.msra.mxu0 0.0
  %133 = vmatprep.subr.mxu0 0.0
  %134 = vmatpush1.msra.mxu0 0.0
  %135 = vmatprep.subr.mxu0 0.0
  %136 = vmatpush1.msra.mxu0 0.0
  %137 = vmatprep.subr.mxu0 0.0
  %138 = vmatpush1.msra.mxu0 0.0
  %139 = vmatprep.subr.mxu0 0.0
  %140 = vmatpush1.msra.mxu0 0.0
  %141 = vmatprep.subr.mxu0 0.0
  %142 = vmatpush1.msra.mxu0 0.0
  %143 = vmatprep.subr.mxu0 0.0
  %144 = vmatpush1.msra.mxu0 0.0
  %145 = vmatprep.subr.mxu0 0.0
  %146 = vmatpush1.msra.mxu0 0.0
  %147 = vmatprep.subr.mxu0 0.0
  %148 = vmatpush1.msra.mxu0 0.0
  %149 = vmatprep.subr.mxu0 0.0
  %150 = vmatpush1.msra.mxu0 0.0
  %151 = vmatprep.subr.mxu0 0.0
  %152 = vmatpush1.msra.mxu0 0.0
  %153 = vmatprep.subr.mxu0 0.0
  %154 = vmatpush1.msra.mxu0 0.0
  %155 = vmatprep.subr.mxu0 0.0
  %156 = vmatpush1.msra.mxu0 0.0
  %157 = vmatprep.subr.mxu0 0.0
  %158 = vmatpush1.msra.mxu0 0.0
  %159 = vmatprep.subr.mxu0 0.0
  %160 = vmatpush1.msra.mxu0 0.0
  %161 = vmatprep.subr.mxu0 0.0
  %162 = vmatpush1.msra.mxu0 0.0
  %163 = vmatprep.subr.mxu0 0.0
  %164 = vmatpush1.msra.mxu0 0.0
  %165 = vmatprep.subr.mxu0 0.0
  %166 = vmatpush1.msra.mxu0 0.0
  %167 = vmatprep.mubr.f32.mxu0 0.0
  %168 = vmatmul.mubr.f32.gmra.mrb[0].mxu0 %v101
  %v169 = vpop.f32.mrb[0].mxu0
  %v170 = vadd.f32 %v97, %v169
  %v171 = vpop.f32.mrb[0].mxu0
  %172 = vdwg.mxu0
  %v173 = vld [vmem:[%s4] sm:$0x1]
  %v175 = vlaneseq
  %v176 = vshrl.u32 %v175, 7
  %v177 = vsub.s32 0, %v176
  %v178 = vrot.slane %v173, %v177
  %v180 = vadd.f32 %v170, %v178
  %vm181 = vcmask 23552
  %v182 = vsel %vm181, %v180, -inf
  %183 = vmax.xlane.f32.xlu0 %v182
  %v184 = vpop.xlane.xlu0 %183
  %v185 = vsub.f32 %v180, %v184
  %v186 = vmul.f32 %v185, 1.442695
  %v187 = vpow.pop %v186
  %v188 = vsel %vm181, %v187, 0.0
  %189 = vadd.xlane.f32.xlu0 %v188
  %v190 = vpop.xlane.xlu0 %189
  %v191 = vrcp.pop %v190
  %v192 = vmul.f32 %v187, %v191
  %vm193 = vcmask 15360
  %194 = vst.msk [vmem:[%s5] sm:$0xff] %vm193, %v192
  // Predicated region
  $region22: #{tpu_custom_call.1} parent=0 // pred_check
    _
  $region23: #{tpu_custom_call.1} parent=0 // pred_check_branch
    %196 = sbr.rel (0) target = $region25
  $region24: #{tpu_custom_call.1} parent=0 // pred_region
    _
  $region25: #{tpu_custom_call.1} parent=0 // pred_fallthru
    _
  // Predicated region
  $region26: #{tpu_custom_call.1} parent=0 // pred_check
    _
  $region27: #{tpu_custom_call.1} parent=0 // pred_check_branch
    %198 = sbr.rel (0) target = $region29
  $region28: #{tpu_custom_call.1} parent=0 // pred_region
    _
  $region29: #{tpu_custom_call.1} parent=0 // pred_fallthru
    _

</llo_original>
